<compile_context>
chip_gen: v5e
topology: v5e:2x2
jax: 0.10.0
libtpu: 0.0.40
codegen_flags: <defaults>
</compile_context>

<pallas_src>
import math

import jax
import jax.numpy as jnp
from jax import lax
from jax.experimental import pallas as pl
from jax.experimental.pallas import tpu as pltpu

# ----------------------------- config ---------------------------------------
HIDDEN = 32      # hidden_size
OUT = 64         # output_size
BATCH = 2
SEQ = 8
NEG_SLOPE = 0.1  # LeakyReLU negative slope


# ----------------------------- kernel ---------------------------------------
def fc_kernel(x_ref, w_ref, o_ref):
    # x_ref: (M, K)   w_ref: (N, K)  (native PyTorch Linear layout)   o_ref: (M, N)
    # Contract x's dim 1 with w's dim 1  ==  x @ w.T, fed straight to the MXU.
    y = lax.dot_general(
        x_ref[...], w_ref[...],
        dimension_numbers=(((1,), (1,)), ((), ())),
        preferred_element_type=jnp.float32,
    )
    # LeakyReLU(0.1): for slope in (0, 1), leaky_relu(y) == max(y, slope * y).
    o_ref[...] = jnp.maximum(y, NEG_SLOPE * y)


def _fc_pallas(x2, weight):
    M, _ = x2.shape
    N = weight.shape[0]
    return pl.pallas_call(
        fc_kernel,
        out_shape=jax.ShapeDtypeStruct((M, N), jnp.float32),
        in_specs=[
            pl.BlockSpec(memory_space=pltpu.MemorySpace.VMEM),  # activations (M, K)
            pl.BlockSpec(memory_space=pltpu.MemorySpace.VMEM),  # weight (N, K)
        ],
        out_specs=pl.BlockSpec(memory_space=pltpu.MemorySpace.VMEM),
    )(x2, weight)


# ----------------------------- wrapper ---------------------------------------
@jax.jit
def fully_connected_forward(x, weight):
    """x: (..., hidden_size).  weight: (output_size, hidden_size) — PyTorch Linear
    weight layout, bias=False.  Returns LeakyReLU_0.1(x @ weight.T)."""
    *lead, K = x.shape
    N = weight.shape[0]
    M = math.prod(lead) if lead else 1

    x2 = x.reshape(M, K)           # contiguous reshape; no data movement
    y = _fc_pallas(x2, weight)     # (M, N)
    return y.reshape(*lead, N)

# TODO(synk): if this layer sits next to another Pallas kernel, fuse FC+LeakyReLU
# as an epilogue there (pass W as an extra VMEM input) to drop this launch entirely.


# ------------------------------ main ------------------------------------------
if __name__ == "__main__":
    key = jax.random.PRNGKey(0)
    k1, k2 = jax.random.split(key)

    x = jax.random.normal(k1, (BATCH, SEQ, HIDDEN), jnp.float32)
    weight = jax.random.normal(k2, (OUT, HIDDEN), jnp.float32) * 0.1

    out = fully_connected_forward(x, weight)
    jax.block_until_ready(out)

    # Pure-JAX reference of the module's forward semantics.
    ref_lin = jnp.einsum('bsk,nk->bsn', x, weight,
                         precision=jax.lax.Precision.HIGHEST)
    ref = jnp.where(ref_lin >= 0, ref_lin, NEG_SLOPE * ref_lin)

    assert out.shape == (BATCH, SEQ, OUT)
    assert bool(jnp.all(jnp.isfinite(out)))
    assert bool(jnp.allclose(out, ref, rtol=1e-4, atol=1e-4))

    print("KERNEL_OK")
</pallas_src>

<mosaic_0001>
module attributes {stable_mosaic.version = 11 : i64} {
  func.func @fc_kernel(%arg0: memref<16x32xf32, #tpu.memory_space<vmem>>, %arg1: memref<64x32xf32, #tpu.memory_space<vmem>>, %arg2: memref<16x64xf32, #tpu.memory_space<vmem>>) attributes {dimension_semantics = [], scalar_prefetch = 0 : i64, scratch_operands = 0 : i64, tpu.core_type = #tpu.core_type<tc>} {
    %c0 = arith.constant 0 : index
    %c0_0 = arith.constant 0 : index
    %0 = vector.load %arg0[%c0, %c0_0] : memref<16x32xf32, #tpu.memory_space<vmem>>, vector<16x32xf32>
    %c0_1 = arith.constant 0 : index
    %c0_2 = arith.constant 0 : index
    %1 = vector.load %arg1[%c0_1, %c0_2] : memref<64x32xf32, #tpu.memory_space<vmem>>, vector<64x32xf32>
    %cst = arith.constant dense<0.000000e+00> : vector<16x64xf32>
    %2 = tpu.matmul %0, %1, %cst {dimension_numbers = #tpu.dot_dimension_numbers<[1], [1], [0], [0], [0, 0, 1, 0], [], []>} : vector<16x32xf32>, vector<64x32xf32>, vector<16x64xf32> -> vector<16x64xf32>
    %cst_3 = arith.constant 1.000000e-01 : f32
    %3 = vector.broadcast %cst_3 : f32 to vector<16x64xf32>
    %4 = arith.mulf %3, %2 : vector<16x64xf32>
    %5 = arith.maximumf %2, %4 : vector<16x64xf32>
    %c0_4 = arith.constant 0 : index
    %c0_5 = arith.constant 0 : index
    %6 = vector.load %arg2[%c0_4, %c0_5] : memref<16x64xf32, #tpu.memory_space<vmem>>, vector<16x64xf32>
    tpu.vector_store %arg2[%c0_4, %c0_5], %5 {strides = array<i32>} : memref<16x64xf32, #tpu.memory_space<vmem>>, vector<16x64xf32>,
    return
  }
}

</mosaic_0001>

<llo_original>
// kernel: fully_connected_forward.1
$region0: #{fully_connected_forward.1}
  #allocation0 [shape = 'u32[]', space=smem, size = 0x4, offset = 0x4, fixed_abs, tag = 'smem constant byte address 0x4 - core index']
  #allocation1 [shape = 'u32[72,128]{1,0:T(1,128)}', space=vmem, size = 0x9000, scoped, tag = 'internal scratch']
  %s0 = inlined_call_operand.vmem [shape: f32[16,32], index: 0, kind: input, shape index: {}]
  %s1 = inlined_call_operand.vmem [shape: f32[64,32], index: 1, kind: input, shape index: {}]
  %s2 = inlined_call_operand.hbm [shape: f32[16,64], index: 2, kind: output, shape index: {}]
  %s3 = sld [smem:[#allocation0]]
  $region18: #{fully_connected_forward.1} parent=0
    _
  %s5 = ssub.s32 1, %s3
  %s6 = scalar_select 0, %s5, %s3
  $region1: #{fully_connected_forward.1} parent=0
    #allocation2 [shape = 'u8[8192]{0}', space=vmem, size = 0x2000, scoped, tag = 'output window, operand 0, single buffered']
    #allocation3 [shape = 's32[1]{0}', space=sflag, size = 0x4, scoped, tag = 'scoped memory for fully_connected_forward.1']
    %7 = vsyncpa [#allocation3], 0
    // Predicated region
    $region2: #{fully_connected_forward.1} parent=1 // pred_check
      _
    $region3: #{fully_connected_forward.1} parent=1 // pred_check_branch
      %9 = sbr.rel (0) target = $region5
    $region4: #{fully_connected_forward.1} parent=1 // pred_region
      _
    $region5: #{fully_connected_forward.1} parent=1 // pred_fallthru
      _
    // Predicated region
    $region6: #{fully_connected_forward.1} parent=1 // pred_check
      _
    $region7: #{fully_connected_forward.1} parent=1 // pred_check_branch
      %11 = sbr.rel (0) target = $region9
    $region8: #{fully_connected_forward.1} parent=1 // pred_region
      _
    $region9: #{fully_connected_forward.1} parent=1 // pred_fallthru
      _
    %v12 = vld [vmem:[%s0] sm:$0xff]
    %v13 = vld [vmem:[%s0 + $0x8] sm:$0xff]
    %v14 = vld [vmem:[%s1] sm:$0xff]
    %v15 = vld [vmem:[%s1 + $0x8] sm:$0xff]
    %v16 = vld [vmem:[%s1 + $0x10] sm:$0xff]
    %v17 = vld [vmem:[%s1 + $0x18] sm:$0xff]
    %v18 = vld [vmem:[%s1 + $0x20] sm:$0xff]
    %v19 = vld [vmem:[%s1 + $0x28] sm:$0xff]
    %v20 = vld [vmem:[%s1 + $0x30] sm:$0xff]
    %v21 = vld [vmem:[%s1 + $0x38] sm:$0xff]
    %vm22 = vcmask 261120
    %v24 = vsel %vm22, %v12, 0
    %v27 = vsel %vm22, %v13, 0
    %v30 = vsel %vm22, %v14, 0
    %v33 = vsel %vm22, %v15, 0
    %v36 = vsel %vm22, %v16, 0
    %v39 = vsel %vm22, %v17, 0
    %v42 = vsel %vm22, %v18, 0
    %v45 = vsel %vm22, %v19, 0
    %v48 = vsel %vm22, %v20, 0
    %v51 = vsel %vm22, %v21, 0
    %53 = vmatpush.xpose.msra.mxu0 0.0
    %54 = vmatpush.xpose.msra.mxu0 0.0
    %55 = vmatpush.xpose.msra.mxu0 0.0
    %56 = vmatpush.xpose.msra.mxu0 0.0
    %57 = vmatpush.xpose.msra.mxu0 0.0
    %58 = vmatpush.xpose.msra.mxu0 0.0
    %59 = vmatpush.xpose.msra.mxu0 0.0
    %60 = vmatpush.xpose.msra.mxu0 0.0
    %61 = vmatpush.xpose.msra.mxu0 %v51
    %62 = vmatpush.xpose.msra.mxu0 %v48
    %63 = vmatpush.xpose.msra.mxu0 %v45
    %64 = vmatpush.xpose.msra.mxu0 %v42
    %65 = vmatpush.xpose.msra.mxu0 %v39
    %66 = vmatpush.xpose.msra.mxu0 %v36
    %67 = vmatpush.xpose.msra.mxu0 %v33
    %68 = vmatpush.xpose.msra.mxu0 %v30
    %69 = vmatmul.f32.gmra.mxu0 %v24
    %v70 = vpop.f32.mrf.mxu0
    %v71 = vadd.f32 0.0, %v70
    %72 = vmatmul.f32.gmra.mxu0 %v27
    %v73 = vpop.f32.mrf.mxu0
    %v74 = vadd.f32 0.0, %v73
    %75 = vdwg.mxu0
    %v76 = vmul.f32 %v71, 0.1
    %v77 = vmul.f32 %v74, 0.1
    %v78 = vmax.f32 %v71, %v76
    %v79 = vmax.f32 %v74, %v77
    %vm80 = vcmask 523264
    %81 = vst.msk [vmem:[#allocation2] sm:$0xff] %vm80, %v78
    %82 = vst.msk [vmem:[#allocation2 + $0x8] sm:$0xff] %vm80, %v79
    // Predicated region
    $region10: #{fully_connected_forward.1} parent=1 // pred_check
      _
    $region11: #{fully_connected_forward.1} parent=1 // pred_check_branch
      %84 = sbr.rel (0) target = $region13
    $region12: #{fully_connected_forward.1} parent=1 // pred_region
      %86 = vsyncadd [#allocation3], 0
      %s87 = sshll.u32 [#allocation2], 4
      %s88 = int_to_ptr.vmem [resolvable:$true] %s87
      %s89 = sshll.u32 %s2, 4
      %s90 = int_to_ptr.hbm [resolvable:$true] %s89
      %95 = dma.vmem_to_hbm [thread:$0]  %s88, 256, %s90, [#allocation3], 128, 128, 8
    $region13: #{fully_connected_forward.1} parent=1 // pred_fallthru
      _
    // Predicated region
    $region14: #{fully_connected_forward.1} parent=1 // pred_check
      _
    $region15: #{fully_connected_forward.1} parent=1 // pred_check_branch
      %97 = sbr.rel (0) target = $region17
    $region16: #{fully_connected_forward.1} parent=1 // pred_region
      %99 = dma.done [#allocation3], 256
    $region17: #{fully_connected_forward.1} parent=1 // pred_fallthru
      _
    %100 = vsyncpa [#allocation3], 1

</llo_original>
